<compile_context>
chip_gen: v7x
topology: tpu7x:2x2x1
jax: 0.10.0
libtpu: 0.0.40
codegen_flags: <defaults>
</compile_context>

<pallas_src>
import math

import jax
import jax.numpy as jnp
from jax import lax
from jax.experimental import pallas as pl
from jax.experimental.pallas import tpu as pltpu


def _sub_tile(n_rows):
    """Static query sub-tile size used inside the kernel (MXU/EUP overlap)."""
    if n_rows < 256 or n_rows % 128 != 0:
        return n_rows
    sub = max(128, (n_rows // 4) // 128 * 128)
    while n_rows % sub != 0:
        sub -= 128
    return sub


def _dot_attention_kernel(q_ref, k_ref, v_ref, m_ref, o_ref, *p_refs):
    # q_ref: (Sq_t, D), k_ref/v_ref: (Sk, D) in their native dtype,
    # m_ref: (Sq_t, Sk) int8 (nonzero == masked).
    p_ref = p_refs[0] if p_refs else None

    d = q_ref.shape[-1]
    scale = 1.0 / math.sqrt(d)

    # K/V loaded once per grid step, cast to bf16 in-kernel for the MXU.
    k = k_ref[...].astype(jnp.bfloat16)
    v = v_ref[...].astype(jnp.bfloat16)

    n_rows = q_ref.shape[0]
    sub = _sub_tile(n_rows)
    n_sub = n_rows // sub

    for i in range(n_sub):
        rs = slice(i * sub, (i + 1) * sub)

        # Fold 1/sqrt(d) into q (Sq_t x D elems, not Sq_t x Sk), then bf16.
        q = (q_ref[rs, :] * scale).astype(jnp.bfloat16)

        # scores = q @ k^T  -- contract last dims directly, f32 accumulation.
        scores = lax.dot_general(
            q, k,
            dimension_numbers=(((1,), (1,)), ((), ())),
            preferred_element_type=jnp.float32,
        )

        # masked_fill(mask, -1e9)
        scores = jnp.where(m_ref[rs, :] != 0, jnp.float32(-1000000000.0), scores)

        # numerically stable softmax over the last dim (all f32)
        s_max = jnp.max(scores, axis=-1, keepdims=True)
        e = jnp.exp(scores - s_max)
        denom = jnp.sum(e, axis=-1, keepdims=True)
        prob = e * pl.reciprocal(denom, approx=True)

        # PV matmul on the MXU in bf16, f32 accumulation.
        out = jnp.dot(prob.astype(jnp.bfloat16), v,
                      preferred_element_type=jnp.float32)

        o_ref[rs, :] = out.astype(o_ref.dtype)
        if p_ref is not None:
            p_ref[rs, :] = prob.astype(p_ref.dtype)


def _vmem_capacity_bytes():
    """Per-core VMEM capacity; conservative 64 MiB (v7x) if query fails."""
    try:
        info = pltpu.get_tpu_info()
        cap = getattr(info, "vmem_capacity_bytes", None)
        if cap:
            return int(cap)
    except Exception:
        pass
    return 64 * 1024 * 1024


def _pick_sq_tile(Sq, Sk, D, q_bytes, kv_bytes, out_bytes, prob_bytes, budget):
    """Largest 128-aligned query tile whose per-step VMEM footprint fits."""
    if Sq <= 128 or Sq % 128 != 0:
        return Sq  # full dim -> always a legal block shape

    def per_step(cand):
        return (
            2 * cand * D * q_bytes            # Q block (double buffered)
            + 2 * 2 * Sk * D * kv_bytes       # K + V blocks (double buffered)
            + 2 * cand * Sk * 1               # mask int8 (double buffered)
            + 2 * cand * D * out_bytes        # O (double buffered)
            + (2 * cand * Sk * prob_bytes if prob_bytes else 0)  # prob
            + 4 * cand * Sk * 4               # live f32 temps (scores/exp/prob/slack)
            + (cand * D + 2 * Sk * D) * 2     # in-kernel bf16 copies of q/k/v
        )

    for cand in (2048, 1024, 512, 256, 128):
        if cand <= Sq and Sq % cand == 0 and per_step(cand) <= budget:
            return cand
    return 128


def dot_attention(query, key, value, mask, *, prob_dtype=jnp.bfloat16,
                  return_prob=True):
    """query/key/value: [B, H, S, D]; mask: [B, H|1, Sq, Sk] (bool/int,
    nonzero == masked).

    Returns (output [B,H,Sq,D], prob_attn [B,H,Sq,Sk]) like the PyTorch module
    (or just output if return_prob=False).

    Notes: Q/K/V go through the MXU in bf16 with f32 accumulation and the
    softmax denominator uses an approximate reciprocal, so prob rows sum to 1
    only to ~1e-3 relative accuracy; pass prob_dtype=jnp.float32 for f32 prob
    storage.
    """
    B, H, Sq, D = query.shape
    Sk = key.shape[2]
    Hm = mask.shape[1]  # 1 (broadcast over heads) or H

    out_dtype = query.dtype
    q_bytes = jnp.dtype(query.dtype).itemsize
    kv_bytes = jnp.dtype(key.dtype).itemsize
    out_bytes = jnp.dtype(out_dtype).itemsize
    prob_bytes = jnp.dtype(prob_dtype).itemsize if return_prob else 0

    # No wrapper-side dtype cast of Q/K/V: DMA native dtype, cast in-kernel.
    qf = query.reshape(B * H, Sq, D)
    kf = key.reshape(B * H, Sk, D)
    vf = value.reshape(B * H, Sk, D)
    mf = mask.reshape(B * Hm, Sq, Sk).astype(jnp.int8)

    # Generation-aware VMEM: ~3/4 of capacity for the compiler limit
    # (~48 MiB on v7x, ~96 MiB on v5e/v6e), 90% of that for tile picking.
    vmem_cap = _vmem_capacity_bytes()
    vmem_limit = (3 * vmem_cap) // 4
    tile_budget = int(vmem_limit * 0.9)

    sq_t = _pick_sq_tile(Sq, Sk, D, q_bytes, kv_bytes, out_bytes, prob_bytes,
                         tile_budget)
    n_q = pl.cdiv(Sq, sq_t)

    grid = (B * H, n_q)

    def q_map(bh, qi):
        return (bh, qi, 0)

    def kv_map(bh, qi):
        # Constant over the (inner) Sq axis -> K/V stay resident across q tiles.
        return (bh, 0, 0)

    if Hm == 1:
        def m_map(bh, qi):
            return (bh // H, qi, 0)
    else:
        def m_map(bh, qi):
            return (bh, qi, 0)

    in_specs = [
        pl.BlockSpec((pl.Squeezed(), sq_t, D), q_map),
        pl.BlockSpec((pl.Squeezed(), Sk, D), kv_map),
        pl.BlockSpec((pl.Squeezed(), Sk, D), kv_map),
        pl.BlockSpec((pl.Squeezed(), sq_t, Sk), m_map),
    ]

    if return_prob:
        out_specs = [
            pl.BlockSpec((pl.Squeezed(), sq_t, D), q_map),
            pl.BlockSpec((pl.Squeezed(), sq_t, Sk), q_map),
        ]
        out_shape = (
            jax.ShapeDtypeStruct((B * H, Sq, D), out_dtype),
            jax.ShapeDtypeStruct((B * H, Sq, Sk), prob_dtype),
        )
    else:
        out_specs = pl.BlockSpec((pl.Squeezed(), sq_t, D), q_map)
        out_shape = jax.ShapeDtypeStruct((B * H, Sq, D), out_dtype)

    result = pl.pallas_call(
        _dot_attention_kernel,
        grid_spec=pltpu.PrefetchScalarGridSpec(
            num_scalar_prefetch=0,
            grid=grid,
            in_specs=in_specs,
            out_specs=out_specs,
        ),
        out_shape=out_shape,
        compiler_params=pltpu.CompilerParams(
            # Outer (larger, fully independent) B*H axis is the one sharded
            # across v7x's two TensorCores; no-op on single-TC v5e/v6e.
            dimension_semantics=("parallel", "parallel"),
            vmem_limit_bytes=vmem_limit,
        ),
    )(qf, kf, vf, mf)

    if return_prob:
        out, prob = result
        return out.reshape(B, H, Sq, D), prob.reshape(B, H, Sq, Sk)
    return result.reshape(B, H, Sq, D)


def _reference(query, key, value, mask):
    d = query.shape[-1]
    scores = jnp.einsum("bhqd,bhkd->bhqk", query, key) / math.sqrt(d)
    scores = jnp.where(mask, -1000000000.0, scores)
    prob = jax.nn.softmax(scores, axis=-1)
    out = jnp.einsum("bhqk,bhkd->bhqd", prob, value)
    return out, prob


if __name__ == "__main__":
    B, H, Sq, Sk, D = 2, 2, 8, 8, 32

    key0 = jax.random.PRNGKey(0)
    kq, kk, kv, km = jax.random.split(key0, 4)

    query = jax.random.normal(kq, (B, H, Sq, D), dtype=jnp.float32)
    key_t = jax.random.normal(kk, (B, H, Sk, D), dtype=jnp.float32)
    value = jax.random.normal(kv, (B, H, Sk, D), dtype=jnp.float32)
    # boolean mask, True = position is masked out
    mask = jax.random.bernoulli(km, p=0.25, shape=(B, H, Sq, Sk))

    out, prob = dot_attention(query, key_t, value, mask)
    out = jax.block_until_ready(out)
    prob = jax.block_until_ready(prob)

    ref_out, ref_prob = _reference(query, key_t, value, mask)
    # bf16 MXU inputs (f32 accumulation) + bf16 prob storage -> looser
    # tolerances than pure f32.
    assert jnp.all(jnp.isfinite(out)) and jnp.all(jnp.isfinite(prob))
    assert jnp.allclose(out, ref_out, atol=3e-2, rtol=3e-2)
    assert jnp.allclose(prob.astype(jnp.float32), ref_prob, atol=3e-2, rtol=3e-2)

    # Also exercise the prob-free fast path.
    out_only = jax.block_until_ready(
        dot_attention(query, key_t, value, mask, return_prob=False))
    assert jnp.allclose(out_only, ref_out, atol=3e-2, rtol=3e-2)

    print("KERNEL_OK")
</pallas_src>

<mosaic_0001>
module attributes {stable_mosaic.version = 11 : i64} {
  func.func @_dot_attention_kernel(%arg0: i32, %arg1: i32, %arg2: memref<1x8x32xf32, #tpu.memory_space<vmem>>, %arg3: memref<1x8x32xf32, #tpu.memory_space<vmem>>, %arg4: memref<1x8x32xf32, #tpu.memory_space<vmem>>, %arg5: memref<1x8x8xi8, #tpu.memory_space<vmem>>, %arg6: memref<1x8x32xf32, #tpu.memory_space<vmem>>, %arg7: memref<1x8x8xbf16, #tpu.memory_space<vmem>>) attributes {dimension_semantics = [#tpu.dimension_semantics<parallel>, #tpu.dimension_semantics<parallel>], iteration_bounds = array<i64: 4, 1>, scalar_prefetch = 0 : i64, scratch_operands = 0 : i64, tpu.core_type = #tpu.core_type<tc>, window_params = [{transform_indices = @transform_0, window_bounds = array<i64: 1, 8, 32>}, {transform_indices = @transform_1, window_bounds = array<i64: 1, 8, 32>}, {transform_indices = @transform_2, window_bounds = array<i64: 1, 8, 32>}, {transform_indices = @transform_3, window_bounds = array<i64: 1, 8, 8>}, {transform_indices = @transform_4, window_bounds = array<i64: 1, 8, 32>}, {transform_indices = @transform_5, window_bounds = array<i64: 1, 8, 8>}]} {
    %c0 = arith.constant 0 : index
    %c0_0 = arith.constant 0 : index
    %c0_1 = arith.constant 0 : index
    %0 = vector.load %arg3[%c0, %c0_0, %c0_1] : memref<1x8x32xf32, #tpu.memory_space<vmem>>, vector<1x8x32xf32>
    %1 = vector.shape_cast %0 : vector<1x8x32xf32> to vector<8x32xf32>
    %2 = arith.truncf %1 : vector<8x32xf32> to vector<8x32xbf16>
    %c0_2 = arith.constant 0 : index
    %c0_3 = arith.constant 0 : index
    %c0_4 = arith.constant 0 : index
    %3 = vector.load %arg4[%c0_2, %c0_3, %c0_4] : memref<1x8x32xf32, #tpu.memory_space<vmem>>, vector<1x8x32xf32>
    %4 = vector.shape_cast %3 : vector<1x8x32xf32> to vector<8x32xf32>
    %5 = arith.truncf %4 : vector<8x32xf32> to vector<8x32xbf16>
    %c0_5 = arith.constant 0 : index
    %c0_6 = arith.constant 0 : index
    %c0_7 = arith.constant 0 : index
    %6 = vector.load %arg2[%c0_5, %c0_6, %c0_7] : memref<1x8x32xf32, #tpu.memory_space<vmem>>, vector<1x8x32xf32>
    %7 = vector.shape_cast %6 : vector<1x8x32xf32> to vector<8x32xf32>
    %cst = arith.constant 0.176776692 : f32
    %8 = vector.broadcast %cst : f32 to vector<8x32xf32>
    %9 = arith.mulf %7, %8 : vector<8x32xf32>
    %10 = arith.truncf %9 : vector<8x32xf32> to vector<8x32xbf16>
    %cst_8 = arith.constant dense<0.000000e+00> : vector<8x8xf32>
    %11 = tpu.matmul %10, %2, %cst_8 {dimension_numbers = #tpu.dot_dimension_numbers<[1], [1], [0], [0], [0, 0, 1, 0], [], []>} : vector<8x32xbf16>, vector<8x32xbf16>, vector<8x8xf32> -> vector<8x8xf32>
    %c0_9 = arith.constant 0 : index
    %c0_10 = arith.constant 0 : index
    %c0_11 = arith.constant 0 : index
    %12 = vector.load %arg5[%c0_9, %c0_10, %c0_11] : memref<1x8x8xi8, #tpu.memory_space<vmem>>, vector<1x8x8xi8>
    %13 = vector.shape_cast %12 : vector<1x8x8xi8> to vector<8x8xi8>
    %c0_i8 = arith.constant 0 : i8
    %14 = vector.broadcast %c0_i8 : i8 to vector<8x8xi8>
    %15 = arith.cmpi ne, %13, %14 : vector<8x8xi8>
    %cst_12 = arith.constant -1.000000e+09 : f32
    %16 = vector.broadcast %cst_12 : f32 to vector<8x8xf32>
    %17 = arith.select %15, %16, %11 : vector<8x8xi1>, vector<8x8xf32>
    %cst_13 = arith.constant dense<0xFF800000> : vector<8xf32>
    %18 = vector.multi_reduction <maximumf>, %17, %cst_13 [1] : vector<8x8xf32> to vector<8xf32>
    %19 = vector.shape_cast %18 : vector<8xf32> to vector<8x1xf32>
    %20 = vector.broadcast %19 : vector<8x1xf32> to vector<8x8xf32>
    %21 = arith.subf %17, %20 : vector<8x8xf32>
    %22 = math.exp %21 : vector<8x8xf32>
    %cst_14 = arith.constant dense<0.000000e+00> : vector<8xf32>
    %23 = vector.multi_reduction <add>, %22, %cst_14 [1] : vector<8x8xf32> to vector<8xf32>
    %24 = vector.shape_cast %23 : vector<8xf32> to vector<8x1xf32>
    %25 = tpu.reciprocal %24 {approx = true} : vector<8x1xf32> -> vector<8x1xf32>
    %26 = vector.broadcast %25 : vector<8x1xf32> to vector<8x8xf32>
    %27 = arith.mulf %22, %26 : vector<8x8xf32>
    %28 = arith.truncf %27 : vector<8x8xf32> to vector<8x8xbf16>
    %cst_15 = arith.constant dense<0.000000e+00> : vector<8x32xf32>
    %29 = tpu.matmul %28, %5, %cst_15 {dimension_numbers = #tpu.dot_dimension_numbers<[1], [0], [0], [1], [0, 0, 1, 1], [], []>} : vector<8x8xbf16>, vector<8x32xbf16>, vector<8x32xf32> -> vector<8x32xf32>
    %c0_16 = arith.constant 0 : index
    %c0_17 = arith.constant 0 : index
    %c0_18 = arith.constant 0 : index
    %30 = vector.load %arg6[%c0_16, %c0_17, %c0_18] : memref<1x8x32xf32, #tpu.memory_space<vmem>>, vector<1x8x32xf32>
    %31 = vector.shape_cast %30 : vector<1x8x32xf32> to vector<8x32xf32>
    %32 = vector.shape_cast %29 : vector<8x32xf32> to vector<1x8x32xf32>
    tpu.vector_store %arg6[%c0_16, %c0_17, %c0_18], %32 {strides = array<i32>} : memref<1x8x32xf32, #tpu.memory_space<vmem>>, vector<1x8x32xf32>,
    %33 = arith.truncf %27 : vector<8x8xf32> to vector<8x8xbf16>
    %c0_19 = arith.constant 0 : index
    %c0_20 = arith.constant 0 : index
    %c0_21 = arith.constant 0 : index
    %34 = vector.load %arg7[%c0_19, %c0_20, %c0_21] : memref<1x8x8xbf16, #tpu.memory_space<vmem>>, vector<1x8x8xbf16>
    %35 = vector.shape_cast %34 : vector<1x8x8xbf16> to vector<8x8xbf16>
    %36 = vector.shape_cast %33 : vector<8x8xbf16> to vector<1x8x8xbf16>
    tpu.vector_store %arg7[%c0_19, %c0_20, %c0_21], %36 {strides = array<i32>} : memref<1x8x8xbf16, #tpu.memory_space<vmem>>, vector<1x8x8xbf16>,
    return
  }
  func.func @transform_0(%arg0: i32, %arg1: i32) -> (i32, i32, i32) {
    %c0_i32 = arith.constant 0 : i32
    %c0_i32_0 = arith.constant 0 : i32
    return %arg0, %arg1, %c0_i32 : i32, i32, i32
  }
  func.func @transform_1(%arg0: i32, %arg1: i32) -> (i32, i32, i32) {
    %c0_i32 = arith.constant 0 : i32
    %c0_i32_0 = arith.constant 0 : i32
    %c0_i32_1 = arith.constant 0 : i32
    return %arg0, %c0_i32, %c0_i32_0 : i32, i32, i32
  }
  func.func @transform_2(%arg0: i32, %arg1: i32) -> (i32, i32, i32) {
    %c0_i32 = arith.constant 0 : i32
    %c0_i32_0 = arith.constant 0 : i32
    %c0_i32_1 = arith.constant 0 : i32
    return %arg0, %c0_i32, %c0_i32_0 : i32, i32, i32
  }
  func.func @transform_3(%arg0: i32, %arg1: i32) -> (i32, i32, i32) {
    %c0_i32 = arith.constant 0 : i32
    %c0_i32_0 = arith.constant 0 : i32
    return %arg0, %arg1, %c0_i32 : i32, i32, i32
  }
  func.func @transform_4(%arg0: i32, %arg1: i32) -> (i32, i32, i32) {
    %c0_i32 = arith.constant 0 : i32
    %c0_i32_0 = arith.constant 0 : i32
    return %arg0, %arg1, %c0_i32 : i32, i32, i32
  }
  func.func @transform_5(%arg0: i32, %arg1: i32) -> (i32, i32, i32) {
    %c0_i32 = arith.constant 0 : i32
    %c0_i32_0 = arith.constant 0 : i32
    return %arg0, %arg1, %c0_i32 : i32, i32, i32
  }
}

</mosaic_0001>

<llo_original>
// kernel: tpu_custom_call.1
$region0: #{tpu_custom_call.1}
  #allocation0 [shape = 'u32[]', space=smem, size = 0x4, offset = 0x4, fixed_abs, tag = 'smem constant byte address 0x4 - core index']
  #allocation1 [shape = 'u32[144,128]{1,0:T(1,128)}', space=vmem, size = 0x12000, scoped, tag = 'internal scratch']
  %s0 = inlined_call_operand.hbm [shape: f32[4,8,32], index: 0, kind: input, shape index: {}]
  %s1 = inlined_call_operand.hbm [shape: f32[4,8,32], index: 1, kind: input, shape index: {}]
  %s2 = inlined_call_operand.hbm [shape: f32[4,8,32], index: 2, kind: input, shape index: {}]
  %s3 = inlined_call_operand.vmem [shape: s8[4,8,8], index: 3, kind: input, shape index: {}]
  %s4 = inlined_call_operand.hbm [shape: f32[4,8,32], index: 4, kind: output, shape index: {0}]
  %s5 = inlined_call_operand.hbm [shape: bf16[4,8,8], index: 5, kind: output, shape index: {1}]
  %6 = xla_tuple %s4, %s5
  %s7 = sld [smem:[#allocation0]]
  $region69: #{tpu_custom_call.1} parent=0
    _
  %s9 = ssub.s32 1, %s7
  %s10 = scalar_select 0, %s9, %s7
  $region1: #{tpu_custom_call.1} parent=0
    #allocation2 [shape = 'u8[8192]{0}', space=vmem, size = 0x2000, scoped, tag = 'input window, operand 0']
    #allocation3 [shape = 's32[2]{0}', space=sflag, size = 0x8, scoped, tag = 'scoped memory for tpu_custom_call.1']
    #allocation4 [shape = 's32[2]{0}', space=sflag, size = 0x8, scoped, tag = 'scoped memory for tpu_custom_call.1']
    #allocation5 [shape = 'u8[8192]{0}', space=vmem, size = 0x2000, scoped, tag = 'input window, operand 1']
    #allocation6 [shape = 's32[2]{0}', space=sflag, size = 0x8, scoped, tag = 'scoped memory for tpu_custom_call.1']
    #allocation7 [shape = 'u8[8192]{0}', space=vmem, size = 0x2000, scoped, tag = 'input window, operand 2']
    #allocation8 [shape = 'u8[8192]{0}', space=vmem, size = 0x2000, scoped, tag = 'output window, operand 0']
    #allocation9 [shape = 'u8[4096]{0}', space=vmem, size = 0x1000, scoped, tag = 'output window, operand 1']
    #allocation10 [shape = 's32[2]{0}', space=sflag, size = 0x8, scoped, tag = 'scoped memory for tpu_custom_call.1']
    %11 = vsyncpa [#allocation3], 0
    %s12 = scalar_lea.sflag [#allocation3], 1
    %13 = vsyncpa %s12, 0
    %14 = vsyncpa [#allocation6], 0
    %s15 = scalar_lea.sflag [#allocation6], 1
    %16 = vsyncpa %s15, 0
    %17 = vsyncpa [#allocation4], 0
    %s18 = scalar_lea.sflag [#allocation4], 1
    %19 = vsyncpa %s18, 0
    %20 = vsyncpa [#allocation10], 0
    %s21 = scalar_lea.sflag [#allocation10], 1
    %22 = vsyncpa %s21, 0
    loop: start=0, step=1, limit=6
    $region2: #{tpu_custom_call.1} parent=1 // loop_pre_header
      _
    $region3: #{tpu_custom_call.1} parent=1 // loop_header
      %s24 = sphi 0, %s28
      %p25 = scmp.ge.s32.totalorder %s24, 6
      %s31 = sphi 0, %s43
      %s32 = sphi 0, %s39
      %s33 = sphi 0, %s31
      %s34 = sphi 0, %s32
      %s35 = sphi 0, %s33
      %s36 = sphi 0, %s34
      %s48 = sphi 0, %s50
      %s51 = sphi 0, %s48
      %s52 = sphi 0, %s51
      %s68 = sphi 0, %s52
      %s74 = sphi 0, %s76
      %s77 = sphi 0, %s74
      %s78 = sphi 0, %s77
      %s94 = sphi 0, %s78
      %s100 = sphi 0, %s102
      %s103 = sphi 0, %s100
      %s104 = sphi 0, %s103
      %s120 = sphi 0, %s104
      %s128 = sphi 0, %s130
      %s131 = sphi 0, %s128
      %s132 = sphi 0, %s131
      %s148 = sphi 0, %s132
      %s156 = sphi 0, %s158
      %s159 = sphi 0, %s156
      %s160 = sphi 0, %s159
      %s176 = sphi 0, %s160
      %s184 = sphi 0, %s186
      %s187 = sphi 0, %s184
      %s188 = sphi 0, %s187
      %s204 = sphi 0, %s188
    $region4: #{tpu_custom_call.1} parent=1 // loop_header_branch
      %27 = sbr.rel (%p25) target = $region8
    $region5: #{tpu_custom_call.1} parent=1 // loop_body
      %s29 = ssub.s32 %s24, 1
      %s30 = ssub.s32 %s24, 2
      %s37 = sadd.s32 1, %s32
      %p38 = scmp.ge.s32.totalorder %s37, 1
      %s39 = scalar_select %p38, 0, %s37
      %s40 = sadd.s32 1, %s31
      %s41 = scalar_select %p38, %s40, %s31
      %p42 = scmp.ge.s32.totalorder %s41, 4
      %s43 = scalar_select %p42, 0, %s41
      %s44 = ssub.s32 %s31, %s43
      %s45 = ssub.s32 %s32, %s39
      %s46 = sor.u32 %s44, %s45
      %p47 = scmp.eq.s32.totalorder %s46, 0
      %s49 = sadd.s32 %s48, 1
      %s50 = scalar_select %p47, %s48, %s49
      %p53 = pneg %p47
      %p54 = scmp.eq.s32.totalorder %s24, 3
      %p55 = por %p53, %p54
      %p56 = scmp.ne.s32.totalorder %s48, %s51
      %p57 = scmp.eq.s32.totalorder %s24, 0
      %p58 = por %p56, %p57
      %p59 = scmp.ne.s32.totalorder %s48, %s51
      %p60 = scmp.eq.s32.totalorder %s29, 3
      %p61 = por %p59, %p60
      %p62 = scmp.ne.s32.totalorder %s51, %s52
      %p63 = scmp.eq.s32.totalorder %s29, 0
      %p64 = por %p62, %p63
      %p65 = scmp.ne.s32.totalorder %s51, %s52
      %p66 = scmp.eq.s32.totalorder %s30, 3
      %p67 = por %p65, %p66
      %p69 = scmp.ne.s32.totalorder %s52, %s68
      %p70 = scmp.eq.s32.totalorder %s30, 0
      %p71 = por %p69, %p70
      %s72 = ssub.s32 %s31, %s43
      %p73 = scmp.eq.s32.totalorder %s72, 0
      %s75 = sadd.s32 %s74, 1
      %s76 = scalar_select %p73, %s74, %s75
      %p79 = pneg %p73
      %p80 = scmp.eq.s32.totalorder %s24, 3
      %p81 = por %p79, %p80
      %p82 = scmp.ne.s32.totalorder %s74, %s77
      %p83 = scmp.eq.s32.totalorder %s24, 0
      %p84 = por %p82, %p83
      %p85 = scmp.ne.s32.totalorder %s74, %s77
      %p86 = scmp.eq.s32.totalorder %s29, 3
      %p87 = por %p85, %p86
      %p88 = scmp.ne.s32.totalorder %s77, %s78
      %p89 = scmp.eq.s32.totalorder %s29, 0
      %p90 = por %p88, %p89
      %p91 = scmp.ne.s32.totalorder %s77, %s78
      %p92 = scmp.eq.s32.totalorder %s30, 3
      %p93 = por %p91, %p92
      %p95 = scmp.ne.s32.totalorder %s78, %s94
      %p96 = scmp.eq.s32.totalorder %s30, 0
      %p97 = por %p95, %p96
      %s98 = ssub.s32 %s31, %s43
      %p99 = scmp.eq.s32.totalorder %s98, 0
      %s101 = sadd.s32 %s100, 1
      %s102 = scalar_select %p99, %s100, %s101
      %p105 = pneg %p99
      %p106 = scmp.eq.s32.totalorder %s24, 3
      %p107 = por %p105, %p106
      %p108 = scmp.ne.s32.totalorder %s100, %s103
      %p109 = scmp.eq.s32.totalorder %s24, 0
      %p110 = por %p108, %p109
      %p111 = scmp.ne.s32.totalorder %s100, %s103
      %p112 = scmp.eq.s32.totalorder %s29, 3
      %p113 = por %p111, %p112
      %p114 = scmp.ne.s32.totalorder %s103, %s104
      %p115 = scmp.eq.s32.totalorder %s29, 0
      %p116 = por %p114, %p115
      %p117 = scmp.ne.s32.totalorder %s103, %s104
      %p118 = scmp.eq.s32.totalorder %s30, 3
      %p119 = por %p117, %p118
      %p121 = scmp.ne.s32.totalorder %s104, %s120
      %p122 = scmp.eq.s32.totalorder %s30, 0
      %p123 = por %p121, %p122
      %s124 = ssub.s32 %s31, %s43
      %s125 = ssub.s32 %s32, %s39
      %s126 = sor.u32 %s124, %s125
      %p127 = scmp.eq.s32.totalorder %s126, 0
      %s129 = sadd.s32 %s128, 1
      %s130 = scalar_select %p127, %s128, %s129
      %p133 = pneg %p127
      %p134 = scmp.eq.s32.totalorder %s24, 3
      %p135 = por %p133, %p134
      %p136 = scmp.ne.s32.totalorder %s128, %s131
      %p137 = scmp.eq.s32.totalorder %s24, 0
      %p138 = por %p136, %p137
      %p139 = scmp.ne.s32.totalorder %s128, %s131
      %p140 = scmp.eq.s32.totalorder %s29, 3
      %p141 = por %p139, %p140
      %p142 = scmp.ne.s32.totalorder %s131, %s132
      %p143 = scmp.eq.s32.totalorder %s29, 0
      %p144 = por %p142, %p143
      %p145 = scmp.ne.s32.totalorder %s131, %s132
      %p146 = scmp.eq.s32.totalorder %s30, 3
      %p147 = por %p145, %p146
      %p149 = scmp.ne.s32.totalorder %s132, %s148
      %p150 = scmp.eq.s32.totalorder %s30, 0
      %p151 = por %p149, %p150
      %s152 = ssub.s32 %s31, %s43
      %s153 = ssub.s32 %s32, %s39
      %s154 = sor.u32 %s152, %s153
      %p155 = scmp.eq.s32.totalorder %s154, 0
      %s157 = sadd.s32 %s156, 1
      %s158 = scalar_select %p155, %s156, %s157
      %p161 = pneg %p155
      %p162 = scmp.eq.s32.totalorder %s24, 3
      %p163 = por %p161, %p162
      %p164 = scmp.ne.s32.totalorder %s156, %s159
      %p165 = scmp.eq.s32.totalorder %s24, 0
      %p166 = por %p164, %p165
      %p167 = scmp.ne.s32.totalorder %s156, %s159
      %p168 = scmp.eq.s32.totalorder %s29, 3
      %p169 = por %p167, %p168
      %p170 = scmp.ne.s32.totalorder %s159, %s160
      %p171 = scmp.eq.s32.totalorder %s29, 0
      %p172 = por %p170, %p171
      %p173 = scmp.ne.s32.totalorder %s159, %s160
      %p174 = scmp.eq.s32.totalorder %s30, 3
      %p175 = por %p173, %p174
      %p177 = scmp.ne.s32.totalorder %s160, %s176
      %p178 = scmp.eq.s32.totalorder %s30, 0
      %p179 = por %p177, %p178
      %s180 = ssub.s32 %s31, %s43
      %s181 = ssub.s32 %s32, %s39
      %s182 = sor.u32 %s180, %s181
      %p183 = scmp.eq.s32.totalorder %s182, 0
      %s185 = sadd.s32 %s184, 1
      %s186 = scalar_select %p183, %s184, %s185
      %p189 = pneg %p183
      %p190 = scmp.eq.s32.totalorder %s24, 3
      %p191 = por %p189, %p190
      %p192 = scmp.ne.s32.totalorder %s184, %s187
      %p193 = scmp.eq.s32.totalorder %s24, 0
      %p194 = por %p192, %p193
      %p195 = scmp.ne.s32.totalorder %s184, %s187
      %p196 = scmp.eq.s32.totalorder %s29, 3
      %p197 = por %p195, %p196
      %p198 = scmp.ne.s32.totalorder %s187, %s188
      %p199 = scmp.eq.s32.totalorder %s29, 0
      %p200 = por %p198, %p199
      %p201 = scmp.ne.s32.totalorder %s187, %s188
      %p202 = scmp.eq.s32.totalorder %s30, 3
      %p203 = por %p201, %p202
      %p205 = scmp.ne.s32.totalorder %s188, %s204
      %p206 = scmp.eq.s32.totalorder %s30, 0
      %p207 = por %p205, %p206
      %p208 = scmp.le.s32.totalorder 1, %s24
      %p209 = scmp.lt.s32.totalorder %s24, 5
      %p210 = pnand %p208, %p209
      %p211 = pneg %p210
      // Predicated region
      $region9: #{tpu_custom_call.1} parent=5 // pred_check
        _
      $region10: #{tpu_custom_call.1} parent=5 // pred_check_branch
        %213 = sbr.rel (%p210) target = $region12
      $region11: #{tpu_custom_call.1} parent=5 // pred_region
        %s214 = ssub.s32 %s24, 1
      $region12: #{tpu_custom_call.1} parent=5 // pred_fallthru
        _
      %p215 = scmp.lt.s32.totalorder %s24, 4
      // Predicated region
      $region13: #{tpu_custom_call.1} parent=5 // pred_check
        %p216 = pneg %p215
      $region14: #{tpu_custom_call.1} parent=5 // pred_check_branch
        %218 = sbr.rel (%p216) target = $region16
      $region15: #{tpu_custom_call.1} parent=5 // pred_region
        // Predicated region
        $region17: #{tpu_custom_call.1} parent=15 // pred_check
          %p219 = pneg %p58
        $region18: #{tpu_custom_call.1} parent=15 // pred_check_branch
          %221 = sbr.rel (%p219) target = $region20
        $region19: #{tpu_custom_call.1} parent=15 // pred_region
          %s222 = sand.u32 %s48, 1
          %s223 = scalar_lea.sflag [#allocation3], %s222
          %s224 = sand.u32 %s48, 1
          %s225 = smul.addr %s224, 8
          %s226 = scalar_lea.vmem [#allocation2], %s225
          %s228 = ssub.s32 128, 128
          %229 = vsyncadd %s223, %s228
          %s230 = sadd.s32 %s32, %s31
          %s231 = smul.addr %s230, 128
          %s232 = scalar_lea.hbm %s0, %s231
          %s234 = sshll.u32 %s226, 4
          %s235 = int_to_ptr.vmem [resolvable:$true] %s234
          %237 = dma.hbm_to_vmem [thread:$0]  %s232, 128, %s235, %s223
        $region20: #{tpu_custom_call.1} parent=15 // pred_fallthru
          _
        // Predicated region
        $region21: #{tpu_custom_call.1} parent=15 // pred_check
          %p238 = pneg %p84
        $region22: #{tpu_custom_call.1} parent=15 // pred_check_branch
          %240 = sbr.rel (%p238) target = $region24
        $region23: #{tpu_custom_call.1} parent=15 // pred_region
          %s241 = sand.u32 %s24, 1
          %s242 = scalar_lea.sflag [#allocation6], %s241
          %s243 = sand.u32 %s74, 1
          %s244 = smul.addr %s243, 8
          %s245 = scalar_lea.vmem [#allocation5], %s244
          %s247 = ssub.s32 128, 128
          %248 = vsyncadd %s242, %s247
          %s249 = smul.addr %s31, 128
          %s250 = scalar_lea.hbm %s1, %s249
          %s252 = sshll.u32 %s245, 4
          %s253 = int_to_ptr.vmem [resolvable:$true] %s252
          %255 = dma.hbm_to_vmem [thread:$0]  %s250, 128, %s253, %s242
        $region24: #{tpu_custom_call.1} parent=15 // pred_fallthru
          _
        // Predicated region
        $region25: #{tpu_custom_call.1} parent=15 // pred_check
          %p256 = pneg %p110
        $region26: #{tpu_custom_call.1} parent=15 // pred_check_branch
          %258 = sbr.rel (%p256) target = $region28
        $region27: #{tpu_custom_call.1} parent=15 // pred_region
          %s259 = sand.u32 %s24, 1
          %s260 = scalar_lea.sflag [#allocation6], %s259
          %s261 = sand.u32 %s100, 1
          %s262 = smul.addr %s261, 8
          %s263 = scalar_lea.vmem [#allocation7], %s262
          %s265 = ssub.s32 128, 128
          %266 = vsyncadd %s260, %s265
          %s267 = smul.addr %s31, 128
          %s268 = scalar_lea.hbm %s2, %s267
          %s270 = sshll.u32 %s263, 4
          %s271 = int_to_ptr.vmem [resolvable:$true] %s270
          %273 = dma.hbm_to_vmem [thread:$0]  %s268, 128, %s271, %s260
        $region28: #{tpu_custom_call.1} parent=15 // pred_fallthru
          _
        // Predicated region
        $region29: #{tpu_custom_call.1} parent=15 // pred_check
          %p274 = pneg %p138
        $region30: #{tpu_custom_call.1} parent=15 // pred_check_branch
          %276 = sbr.rel (%p274) target = $region32
        $region31: #{tpu_custom_call.1} parent=15 // pred_region
          %p277 = scmp.lt.s32.totalorder %s31, 3
          %s278 = scalar_select %p277, %s31, 3
          %p279 = scmp.lt.s32.totalorder %s32, 0
          %s280 = scalar_select %p279, %s32, 0
          %s281 = sadd.s32 %s280, %s278
          %s282 = smul.addr %s281, 2
          %s283 = scalar_lea.vmem %s3, %s282
        $region32: #{tpu_custom_call.1} parent=15 // pred_fallthru
          _
      $region16: #{tpu_custom_call.1} parent=5 // pred_fallthru
        _
      %p284 = scmp.le.s32.totalorder 1, %s24
      %p285 = scmp.lt.s32.totalorder %s24, 5
      %p286 = pnand %p284, %p285
      %p287 = pneg %p286
      // Predicated region
      $region33: #{tpu_custom_call.1} parent=5 // pred_check
        _
      $region34: #{tpu_custom_call.1} parent=5 // pred_check_branch
        %289 = sbr.rel (%p286) target = $region36
      $region35: #{tpu_custom_call.1} parent=5 // pred_region
        %s290 = ssub.s32 %s24, 1
        %s291 = sand.u32 %s51, 1
        %s292 = scalar_lea.sflag [#allocation3], %s291
        %s293 = sand.u32 %s51, 1
        %s294 = smul.addr %s293, 8
        %s295 = scalar_lea.vmem [#allocation2], %s294
        // Predicated region
        $region37: #{tpu_custom_call.1} parent=35 // pred_check
          %p296 = pneg %p64
        $region38: #{tpu_custom_call.1} parent=35 // pred_check_branch
          %298 = sbr.rel (%p296) target = $region40
        $region39: #{tpu_custom_call.1} parent=35 // pred_region
          %299 = dma.done %s292, 128
        $region40: #{tpu_custom_call.1} parent=35 // pred_fallthru
          _
        %s300 = sand.u32 %s29, 1
        %s301 = scalar_lea.sflag [#allocation6], %s300
        %s302 = sand.u32 %s77, 1
        %s303 = smul.addr %s302, 8
        %s304 = scalar_lea.vmem [#allocation5], %s303
        // Predicated region
        $region41: #{tpu_custom_call.1} parent=35 // pred_check
          %p305 = pneg %p90
        $region42: #{tpu_custom_call.1} parent=35 // pred_check_branch
          %307 = sbr.rel (%p305) target = $region44
        $region43: #{tpu_custom_call.1} parent=35 // pred_region
          %308 = dma.done %s301, 128
        $region44: #{tpu_custom_call.1} parent=35 // pred_fallthru
          _
        %s309 = sand.u32 %s29, 1
        %s310 = scalar_lea.sflag [#allocation6], %s309
        %s311 = sand.u32 %s103, 1
        %s312 = smul.addr %s311, 8
        %s313 = scalar_lea.vmem [#allocation7], %s312
        // Predicated region
        $region45: #{tpu_custom_call.1} parent=35 // pred_check
          %p314 = pneg %p116
        $region46: #{tpu_custom_call.1} parent=35 // pred_check_branch
          %316 = sbr.rel (%p314) target = $region48
        $region47: #{tpu_custom_call.1} parent=35 // pred_region
          %317 = dma.done %s310, 128
        $region48: #{tpu_custom_call.1} parent=35 // pred_fallthru
          _
        %s318 = sand.u32 %s51, 1
        %s319 = scalar_lea.sflag [#allocation3], %s318
        %s320 = sand.u32 %s51, 1
        %s321 = smul.addr %s320, 8
        %s322 = scalar_lea.vmem [#allocation2], %s321
        %p323 = pneg %p64
        %p324 = pneg %p61
        %s325 = sand.u32 %s29, 1
        %s326 = scalar_lea.sflag [#allocation6], %s325
        %s327 = sand.u32 %s77, 1
        %s328 = smul.addr %s327, 8
        %s329 = scalar_lea.vmem [#allocation5], %s328
        %p330 = pneg %p90
        %p331 = pneg %p87
        %s332 = sand.u32 %s29, 1
        %s333 = scalar_lea.sflag [#allocation6], %s332
        %s334 = sand.u32 %s103, 1
        %s335 = smul.addr %s334, 8
        %s336 = scalar_lea.vmem [#allocation7], %s335
        %p337 = pneg %p116
        %p338 = pneg %p113
        %p339 = scmp.lt.s32.totalorder %s33, 3
        %s340 = scalar_select %p339, %s33, 3
        %p341 = scmp.lt.s32.totalorder %s34, 0
        %s342 = scalar_select %p341, %s34, 0
        %s343 = sadd.s32 %s342, %s340
        %s344 = smul.addr %s343, 2
        %s345 = scalar_lea.vmem %s3, %s344
        %p346 = pneg %p144
        %p347 = pneg %p141
        %p348 = pneg %p172
        %p349 = pneg %p169
        %s350 = sand.u32 %s159, 1
        %s351 = scalar_lea.sflag [#allocation4], %s350
        %s352 = sand.u32 %s159, 1
        %s353 = smul.addr %s352, 8
        %s354 = scalar_lea.vmem [#allocation8], %s353
        %p355 = pneg %p200
        %p356 = pneg %p197
        %s357 = sand.u32 %s187, 1
        %s358 = scalar_lea.sflag [#allocation10], %s357
        %s359 = sand.u32 %s187, 1
        %s360 = smul.addr %s359, 4
        %s361 = scalar_lea.vmem [#allocation9], %s360
        %p362 = scmp.lt.s32.totalorder %s33, 3
        %s363 = scalar_select %p362, %s33, 3
        %p364 = scmp.lt.s32.totalorder %s34, 0
        %s365 = scalar_select %p364, %s34, 0
        %s366 = sadd.s32 %s365, %s363
        %s367 = smul.addr %s366, 2
        %s368 = scalar_lea.vmem %s3, %s367
        %v372 = vld [vmem:[%s304] sm:$0xff]
        %v373 = vpack.c.bf16 %v372, %v372
        %v374 = vld [vmem:[%s313] sm:$0xff]
        %v375 = vpack.c.bf16 %v374, %v374
        %v376 = vld [vmem:[%s295] sm:$0xff]
        %v377 = vmul.f32 %v376, 0.17677669
        %v378 = vpack.c.bf16 %v377, %v377
        %vm379 = vcmask 261120
        %v381 = vsel %vm379, %v378, 0
        %v384 = vsel %vm379, %v373, 0
        %386 = vmatprep.subr.bf16.mxu0 0
        %387 = vmatpush1.bf16.xpose.msra.mxu0 %v384
        %388 = vmatprep.subr.bf16.mxu0 0
        %389 = vmatpush1.bf16.xpose.msra.mxu0 0
        %390 = vmatprep.subr.bf16.mxu0 0
        %391 = vmatpush1.bf16.xpose.msra.mxu0 0
        %392 = vmatprep.subr.bf16.mxu0 0
        %393 = vmatpush1.bf16.xpose.msra.mxu0 0
        %394 = vmatprep.subr.bf16.mxu0 0
        %395 = vmatpush1.bf16.xpose.msra.mxu0 0
        %396 = vmatprep.subr.bf16.mxu0 0
        %397 = vmatpush1.bf16.xpose.msra.mxu0 0
        %398 = vmatprep.subr.bf16.mxu0 0
        %399 = vmatpush1.bf16.xpose.msra.mxu0 0
        %400 = vmatprep.subr.bf16.mxu0 0
        %401 = vmatpush1.bf16.xpose.msra.mxu0 0
        %402 = vmatprep.subr.bf16.mxu0 0
        %403 = vmatpush1.bf16.xpose.msra.mxu0 0
        %404 = vmatprep.subr.bf16.mxu0 0
        %405 = vmatpush1.bf16.xpose.msra.mxu0 0
        %406 = vmatprep.subr.bf16.mxu0 0
        %407 = vmatpush1.bf16.xpose.msra.mxu0 0
        %408 = vmatprep.subr.bf16.mxu0 0
        %409 = vmatpush1.bf16.xpose.msra.mxu0 0
        %410 = vmatprep.subr.bf16.mxu0 0
        %411 = vmatpush1.bf16.xpose.msra.mxu0 0
        %412 = vmatprep.subr.bf16.mxu0 0
        %413 = vmatpush1.bf16.xpose.msra.mxu0 0
        %414 = vmatprep.subr.bf16.mxu0 0
        %415 = vmatpush1.bf16.xpose.msra.mxu0 0
        %416 = vmatprep.subr.bf16.mxu0 0
        %417 = vmatpush1.bf16.xpose.msra.mxu0 0
        %418 = vmatprep.mubr.bf16.mxu0 0
        %419 = vmatmul.mubr.bf16.gmra.mrb[0].mxu0 %v381
        %v420 = vpop.f32.mrb[0].mxu0
        %v421 = vadd.f32 0.0, %v420
        %v422 = vpop.f32.mrb[0].mxu0
        %v423 = vpop.f32.mrb[0].mxu0
        %v424 = vpop.f32.mrb[0].mxu0
        %425 = vdwg.mxu0
        %v426 = vld [vmem:[%s368] sm:$0x3]
        %vm427 = vnez %v426
        %v428 = vsel %vm427, 16843009, 0
        %v429 = vunpack.c.0.s8 %v428
        %vm430 = vcmp.ne.s32.totalorder %v429, 0
        %v431 = vsel %vm430, -1e+09, %v421
        %vm432 = vcmask 64512
        %v433 = vsel %vm432, %v431, -inf
        %434 = vmax.xlane.f32.xlu0 %v433
        %v435 = vpop.xlane.xlu0 %434
        %v436 = vsub.f32 %v431, %v435
        %v437 = vmul.f32 %v436, 1.442695
        %v438 = vpow.pop %v437
        %v439 = vsel %vm432, %v438, 0.0
        %440 = vadd.xlane.f32.xlu0 %v439
        %v441 = vpop.xlane.xlu0 %440
        %v442 = vrcp.pop %v441
        %v443 = vmul.f32 %v438, %v442
        %v444 = vpack.c.bf16 %v443, %v443
        %v446 = vsel %vm432, %v444, 0
        %vm448 = vcmask 1043456
        %v450 = vsel %vm448, %v375, 0
        %452 = vmatprep.subr.bf16.mxu0 0
        %453 = vmatpush1.bf16.msra.mxu0 %v450
        %454 = vmatprep.subr.bf16.mxu0 0
        %455 = vmatpush1.bf16.msra.mxu0 0
        %456 = vmatprep.subr.bf16.mxu0 0
        %457 = vmatpush1.bf16.msra.mxu0 0
        %458 = vmatprep.subr.bf16.mxu0 0
        %459 = vmatpush1.bf16.msra.mxu0 0
        %460 = vmatprep.subr.bf16.mxu0 0
        %461 = vmatpush1.bf16.msra.mxu0 0
        %462 = vmatprep.subr.bf16.mxu0 0
        %463 = vmatpush1.bf16.msra.mxu0 0
        %464 = vmatprep.subr.bf16.mxu0 0
        %465 = vmatpush1.bf16.msra.mxu0 0
        %466 = vmatprep.subr.bf16.mxu0 0
        %467 = vmatpush1.bf16.msra.mxu0 0
        %468 = vmatprep.subr.bf16.mxu0 0
        %469 = vmatpush1.bf16.msra.mxu0 0
        %470 = vmatprep.subr.bf16.mxu0 0
        %471 = vmatpush1.bf16.msra.mxu0 0
        %472 = vmatprep.subr.bf16.mxu0 0
        %473 = vmatpush1.bf16.msra.mxu0 0
        %474 = vmatprep.subr.bf16.mxu0 0
        %475 = vmatpush1.bf16.msra.mxu0 0
        %476 = vmatprep.subr.bf16.mxu0 0
        %477 = vmatpush1.bf16.msra.mxu0 0
        %478 = vmatprep.subr.bf16.mxu0 0
        %479 = vmatpush1.bf16.msra.mxu0 0
        %480 = vmatprep.subr.bf16.mxu0 0
        %481 = vmatpush1.bf16.msra.mxu0 0
        %482 = vmatprep.subr.bf16.mxu0 0
        %483 = vmatpush1.bf16.msra.mxu0 0
        %484 = vmatprep.mubr.bf16.mxu0 0
        %485 = vmatmul.mubr.bf16.gmra.mrb[0].mxu0 %v446
        %v486 = vpop.f32.mrb[0].mxu0
        %v487 = vadd.f32 0.0, %v486
        %v488 = vpop.f32.mrb[0].mxu0
        %v489 = vpop.f32.mrb[0].mxu0
        %v490 = vpop.f32.mrb[0].mxu0
        %491 = vdwg.mxu0
        %492 = vst.msk [vmem:[%s354] sm:$0xff] %vm379, %v487
        %vm493 = vcmask 60416
        %494 = vst.msk [vmem:[%s361] sm:$0xf] %vm493, %v444
        %s495 = sand.u32 %s159, 1
        %s496 = scalar_lea.sflag [#allocation4], %s495
        %s497 = sand.u32 %s159, 1
        %s498 = smul.addr %s497, 8
        %s499 = scalar_lea.vmem [#allocation8], %s498
        %s500 = sand.u32 %s187, 1
        %s501 = scalar_lea.sflag [#allocation10], %s500
        %s502 = sand.u32 %s187, 1
        %s503 = smul.addr %s502, 4
        %s504 = scalar_lea.vmem [#allocation9], %s503
        // Predicated region
        $region49: #{tpu_custom_call.1} parent=35 // pred_check
          %p505 = pneg %p169
        $region50: #{tpu_custom_call.1} parent=35 // pred_check_branch
          %507 = sbr.rel (%p505) target = $region52
        $region51: #{tpu_custom_call.1} parent=35 // pred_region
          %s509 = ssub.s32 128, 128
          %510 = vsyncadd %s496, %s509
          %s511 = sadd.s32 %s34, %s33
          %s512 = smul.addr %s511, 128
          %s513 = scalar_lea.hbm %s4, %s512
          %s515 = sshll.u32 %s499, 4
          %s516 = int_to_ptr.vmem [resolvable:$true] %s515
          %518 = dma.vmem_to_hbm [thread:$0]  %s516, 128, %s513, %s496
        $region52: #{tpu_custom_call.1} parent=35 // pred_fallthru
          _
        // Predicated region
        $region53: #{tpu_custom_call.1} parent=35 // pred_check
          %p519 = pneg %p197
        $region54: #{tpu_custom_call.1} parent=35 // pred_check_branch
          %521 = sbr.rel (%p519) target = $region56
        $region55: #{tpu_custom_call.1} parent=35 // pred_region
          %s523 = ssub.s32 64, 64
          %524 = vsyncadd %s501, %s523
          %s525 = sadd.s32 %s34, %s33
          %s526 = smul.addr %s525, 64
          %s527 = scalar_lea.hbm %s5, %s526
          %s529 = sshll.u32 %s504, 4
          %s530 = int_to_ptr.vmem [resolvable:$true] %s529
          %532 = dma.vmem_to_hbm [thread:$0]  %s530, 64, %s527, %s501
        $region56: #{tpu_custom_call.1} parent=35 // pred_fallthru
          _
      $region36: #{tpu_custom_call.1} parent=5 // pred_fallthru
        _
      %p533 = scmp.le.s32.totalorder 2, %s24
      // Predicated region
      $region57: #{tpu_custom_call.1} parent=5 // pred_check
        %p534 = pneg %p533
      $region58: #{tpu_custom_call.1} parent=5 // pred_check_branch
        %536 = sbr.rel (%p534) target = $region60
      $region59: #{tpu_custom_call.1} parent=5 // pred_region
        %s537 = ssub.s32 %s24, 2
        // Predicated region
        $region61: #{tpu_custom_call.1} parent=59 // pred_check
          %p538 = pneg %p175
        $region62: #{tpu_custom_call.1} parent=59 // pred_check_branch
          %540 = sbr.rel (%p538) target = $region64
        $region63: #{tpu_custom_call.1} parent=59 // pred_region
          %s541 = sand.u32 %s160, 1
          %s542 = scalar_lea.sflag [#allocation4], %s541
          %s543 = sand.u32 %s160, 1
          %s544 = smul.addr %s543, 8
          %s545 = scalar_lea.vmem [#allocation8], %s544
          %546 = dma.done %s542, 128
        $region64: #{tpu_custom_call.1} parent=59 // pred_fallthru
          _
        // Predicated region
        $region65: #{tpu_custom_call.1} parent=59 // pred_check
          %p547 = pneg %p203
        $region66: #{tpu_custom_call.1} parent=59 // pred_check_branch
          %549 = sbr.rel (%p547) target = $region68
        $region67: #{tpu_custom_call.1} parent=59 // pred_region
          %s550 = sand.u32 %s188, 1
          %s551 = scalar_lea.sflag [#allocation10], %s550
          %s552 = sand.u32 %s188, 1
          %s553 = smul.addr %s552, 4
          %s554 = scalar_lea.vmem [#allocation9], %s553
          %555 = dma.done %s551, 64
        $region68: #{tpu_custom_call.1} parent=59 // pred_fallthru
          _
      $region60: #{tpu_custom_call.1} parent=5 // pred_fallthru
        _
    $region6: #{tpu_custom_call.1} parent=1 // loop_footer
      %s28 = sadd.s32 1, %s24
    $region7: #{tpu_custom_call.1} parent=1 // loop_footer_branch
      %23 = sbr.rel target = $region3
    $region8: #{tpu_custom_call.1} parent=1 // loop_exit
      _
    %556 = vsyncpa [#allocation3], 1
    %s557 = scalar_lea.sflag [#allocation3], 1
    %558 = vsyncpa %s557, 1
    %559 = vsyncpa [#allocation6], 1
    %s560 = scalar_lea.sflag [#allocation6], 1
    %561 = vsyncpa %s560, 1
    %562 = vsyncpa [#allocation4], 1
    %s563 = scalar_lea.sflag [#allocation4], 1
    %564 = vsyncpa %s563, 1
    %565 = vsyncpa [#allocation10], 1
    %s566 = scalar_lea.sflag [#allocation10], 1
    %567 = vsyncpa %s566, 1

</llo_original>
